<compile_context>
chip_gen: v5e
topology: v5e:2x2
jax: 0.10.0
libtpu: 0.0.40
codegen_flags: <defaults>
</compile_context>

<pallas_src>
import functools

import jax
import jax.numpy as jnp
from jax.experimental import pallas as pl
from jax.experimental.pallas import tpu as pltpu

# Default quantile weights from the module's __init__ (deterministic, in-script).
QUANTILE_WEIGHTS = (0.5, 0.7, 1.0, 1.5, 2.0)

_LANES = 128
_SUBLANES = 8
_TILE_BYTES_TARGET = 2 << 20   # ~2 MiB per streamed input tile
_INNER_STEPS_TARGET = 4        # enough grid steps to keep the DMA pipeline busy


def _round_up(x, m):
    return ((x + m - 1) // m) * m


def _num_tensorcores():
    """Width of the parallel outer axis: >1 only on multi-TensorCore chips."""
    try:
        kind = jax.devices()[0].device_kind.lower()
    except Exception:
        return 1
    return 2 if any(tag in kind for tag in ("v4", "v5p", "v7")) else 1


def _qwmse_kernel(pred_ref, targ_ref, quant_ref, out_ref, acc_ref, *,
                  quantile_weights):
    """Quantile-weighted squared error, accumulated over the inner grid axis."""
    inner = pl.program_id(1)

    @pl.when(inner == 0)
    def _init():
        acc_ref[...] = jnp.zeros_like(acc_ref)

    tb, kf = pred_ref.shape
    r = tb // _SUBLANES
    pred = pred_ref[...].astype(jnp.float32).reshape(r, _SUBLANES, kf)
    targ = targ_ref[...].astype(jnp.float32).reshape(r, _SUBLANES, kf)

    # Bucket weights. quant_ref holds quantile rows 1..n_w-1 (ascending), each
    # pre-broadcast to 8 sublanes, so the compare below only needs a free
    # leading-axis broadcast. Row 0 (the per-feature minimum, prob=0.0) is
    # folded into the initial weight: `targ >= min` is always true for real
    # rows, and padded rows have pred == targ == 0 so their weight is
    # irrelevant. Applying `>=` in ascending order and letting later buckets
    # overwrite earlier ones reproduces the PyTorch (>= lo) & (< hi) logic.
    w = jnp.full_like(targ, jnp.float32(quantile_weights[0]))
    for i, wt in enumerate(quantile_weights[1:]):
        w = jnp.where(targ >= quant_ref[i], jnp.float32(wt), w)

    diff = pred - targ
    # Row-fold the weighted SSE into the small (8, kf) accumulator: pure vreg
    # adds, no full-tile accumulator load/store per step.
    acc_ref[...] += jnp.sum(diff * diff * w, axis=0)

    # Cross-lane reduction only once per outer block (epilogue), not per step.
    @pl.when(inner == pl.num_programs(1) - 1)
    def _finalize():
        out_ref[0, 0] = jnp.sum(acc_ref[...])


def quantile_weighted_mse_loss(predictions, targets, batch=None,
                               quantile_weights=QUANTILE_WEIGHTS):
    """JAX/Pallas equivalent of QuantileWeightedMSELoss.forward.

    `batch` is accepted (as in the PyTorch signature) but unused.
    """
    del batch
    B, F = predictions.shape
    n_w = len(quantile_weights)

    # Per-feature quantiles (torch.quantile 'linear' == jnp.quantile default).
    # TODO(synk): the O(B log B) sort inside jnp.quantile has no clean Pallas
    # equivalent and re-reads targets from HBM; for very large B this pre-pass,
    # not the streaming kernel below, dominates end-to-end time.
    probs = jnp.linspace(0.0, 1.0, n_w + 1)
    quantiles = jnp.quantile(targets.astype(jnp.float32), probs, axis=0)  # (n_w+1, F)

    # ---- lane-dense packing: fold k batch rows into the lane axis ----------
    k = max(1, _LANES // F) if F <= _LANES else 1
    kf = k * F
    n_rows = pl.cdiv(B, k)                       # rows of the folded view

    # ---- adaptive tiling: minimize zero padding, keep tiles pipeline-sized --
    n_cores = _num_tensorcores()
    n_outer = n_cores if n_rows >= _SUBLANES * n_cores else 1
    rows_per_outer = pl.cdiv(n_rows, n_outer)

    itemsize = jnp.dtype(predictions.dtype).itemsize
    row_bytes = max(kf * itemsize, 1)
    tb_cap = max(_SUBLANES,
                 (_TILE_BYTES_TARGET // row_bytes) // _SUBLANES * _SUBLANES)

    tb0 = _round_up(pl.cdiv(rows_per_outer, _INNER_STEPS_TARGET), _SUBLANES)
    tb0 = min(max(tb0, _SUBLANES), tb_cap)
    n_inner = pl.cdiv(rows_per_outer, tb0)
    # Re-fit tb downward for this step count: padding is now < 8 rows per step.
    tb = _round_up(pl.cdiv(rows_per_outer, n_inner), _SUBLANES)

    rows_pad = n_outer * n_inner * tb
    b_pad = rows_pad * k

    # Zero padding contributes 0 to the weighted SSE (pred == targ == 0, so the
    # bucket weight picked for padded rows never matters).
    if b_pad != B:
        pad = ((0, b_pad - B), (0, 0))
        predictions_p = jnp.pad(predictions, pad)
        targets_p = jnp.pad(targets, pad)
    else:
        predictions_p, targets_p = predictions, targets

    pred2 = predictions_p.reshape(rows_pad, kf)
    targ2 = targets_p.reshape(rows_pad, kf)

    # Quantile rows actually used by the kernel: 1..n_w-1 (the minimum row is
    # folded into the initial weight; the max row is never needed). Tile across
    # the lane fold, then pre-broadcast to 8 sublanes so the in-kernel compare
    # needs no broadcast_in_dim work on the VPU.
    q_used = jnp.tile(quantiles[1:n_w], (1, k))                         # (n_w-1, kf)
    q_bcast = jnp.broadcast_to(q_used[:, None, :], (n_w - 1, _SUBLANES, kf))
    q_bcast = jnp.asarray(q_bcast, dtype=jnp.float32)

    row_spec = pl.BlockSpec((tb, kf), lambda o, i: (o * n_inner + i, 0))
    partials = pl.pallas_call(
        functools.partial(
            _qwmse_kernel,
            quantile_weights=tuple(float(x) for x in quantile_weights)),
        out_shape=jax.ShapeDtypeStruct((n_outer, 1), jnp.float32),
        grid=(n_outer, n_inner),
        in_specs=[
            row_spec,                                                # predictions
            row_spec,                                                # targets
            pl.BlockSpec((n_w - 1, _SUBLANES, kf),
                         lambda o, i: (0, 0, 0)),                    # quantiles (resident)
        ],
        out_specs=pl.BlockSpec((1, 1), lambda o, i: (o, 0),
                               memory_space=pltpu.MemorySpace.SMEM),
        scratch_shapes=[pltpu.VMEM((_SUBLANES, kf), jnp.float32)],
        compiler_params=pltpu.CompilerParams(
            dimension_semantics=("parallel", "arbitrary")),
    )(pred2, targ2, q_bcast)

    total = jnp.sum(partials)
    return (total / jnp.float32(B * F)).astype(predictions.dtype)


def _reference(predictions, targets, quantile_weights=QUANTILE_WEIGHTS):
    """Pure-JAX replica of the PyTorch forward for verification."""
    n_w = len(quantile_weights)
    probs = jnp.linspace(0.0, 1.0, n_w + 1)
    quantiles = jnp.quantile(targets.astype(jnp.float32), probs, axis=0)  # (n_w+1, F)
    w = jnp.ones_like(targets, dtype=jnp.float32)
    for i in range(n_w):
        lo = quantiles[i][None, :]
        if i < n_w - 1:
            hi = quantiles[i + 1][None, :]
            mask = (targets >= lo) & (targets < hi)
        else:
            mask = targets >= lo
        w = jnp.where(mask, jnp.float32(quantile_weights[i]), w)
    mse = (predictions.astype(jnp.float32) - targets.astype(jnp.float32)) ** 2
    return jnp.mean(mse * w)


if __name__ == "__main__":
    key = jax.random.PRNGKey(0)
    k_pred, k_targ, k_pred2, k_targ2 = jax.random.split(key, 4)

    # Small shape consistent with the module's (batch, features) inputs.
    B, F = 16, 8
    predictions = jax.random.normal(k_pred, (B, F), dtype=jnp.float32)
    targets = jax.random.normal(k_targ, (B, F), dtype=jnp.float32)

    loss = jax.block_until_ready(
        quantile_weighted_mse_loss(predictions, targets, batch=None))
    ref = jax.block_until_ready(_reference(predictions, targets))
    assert jnp.allclose(loss, ref, rtol=1e-5, atol=1e-6), (loss, ref)

    # Larger, non-multiple batch: exercises zero-padding, the adaptive tiled
    # grid and (on multi-TC chips) the two-partial megacore path.
    B2, F2 = 24583, 8
    predictions2 = jax.random.normal(k_pred2, (B2, F2), dtype=jnp.float32)
    targets2 = jax.random.normal(k_targ2, (B2, F2), dtype=jnp.float32)

    loss2 = jax.block_until_ready(
        quantile_weighted_mse_loss(predictions2, targets2, batch=None))
    ref2 = jax.block_until_ready(_reference(predictions2, targets2))
    assert jnp.allclose(loss2, ref2, rtol=1e-4, atol=1e-6), (loss2, ref2)

    print("KERNEL_OK")
</pallas_src>

<mosaic_0001>
module attributes {stable_mosaic.version = 11 : i64} {
  func.func @_qwmse_kernel(%arg0: i32, %arg1: i32, %arg2: memref<8x128xf32, #tpu.memory_space<vmem>>, %arg3: memref<8x128xf32, #tpu.memory_space<vmem>>, %arg4: memref<4x8x128xf32, #tpu.memory_space<vmem>>, %arg5: memref<1x1xf32, #tpu.memory_space<smem>>, %arg6: memref<8x128xf32, #tpu.memory_space<vmem>>) attributes {dimension_semantics = [#tpu.dimension_semantics<parallel>, #tpu.dimension_semantics<arbitrary>], iteration_bounds = array<i64: 1, 1>, scalar_prefetch = 0 : i64, scratch_operands = 1 : i64, tpu.core_type = #tpu.core_type<tc>, window_params = [{transform_indices = @transform_0, window_bounds = array<i64: 8, 128>}, {transform_indices = @transform_1, window_bounds = array<i64: 8, 128>}, {pipeline_mode = #tpu.pipeline_mode<synchronous>, transform_indices = @transform_2, window_bounds = array<i64: 4, 8, 128>}, {transform_indices = @transform_3, window_bounds = array<i64: 1, 1>}]} {
    %c0_i32 = arith.constant 0 : i32
    %0 = arith.cmpi eq, %arg1, %c0_i32 : i32
    %1 = arith.extui %0 : i1 to i32
    %c0_i32_0 = arith.constant 0 : i32
    %2 = arith.cmpi ne, %1, %c0_i32_0 : i32
    scf.if %2 {
      %cst_24 = arith.constant 0.000000e+00 : f32
      %42 = vector.broadcast %cst_24 : f32 to vector<8x128xf32>
      %c0_25 = arith.constant 0 : index
      %c0_26 = arith.constant 0 : index
      %43 = vector.load %arg6[%c0_25, %c0_26] : memref<8x128xf32, #tpu.memory_space<vmem>>, vector<8x128xf32>
      tpu.vector_store %arg6[%c0_25, %c0_26], %42 {strides = array<i32>} : memref<8x128xf32, #tpu.memory_space<vmem>>, vector<8x128xf32>,
    } else {
    }
    %c0 = arith.constant 0 : index
    %c0_1 = arith.constant 0 : index
    %3 = vector.load %arg2[%c0, %c0_1] : memref<8x128xf32, #tpu.memory_space<vmem>>, vector<8x128xf32>
    %4 = vector.shape_cast %3 : vector<8x128xf32> to vector<1x8x128xf32>
    %c0_2 = arith.constant 0 : index
    %c0_3 = arith.constant 0 : index
    %5 = vector.load %arg3[%c0_2, %c0_3] : memref<8x128xf32, #tpu.memory_space<vmem>>, vector<8x128xf32>
    %6 = vector.shape_cast %5 : vector<8x128xf32> to vector<1x8x128xf32>
    %cst = arith.constant 5.000000e-01 : f32
    %7 = vector.broadcast %cst : f32 to vector<1x8x128xf32>
    %c0_4 = arith.constant 0 : index
    %c0_5 = arith.constant 0 : index
    %c0_6 = arith.constant 0 : index
    %8 = vector.load %arg4[%c0_4, %c0_5, %c0_6] : memref<4x8x128xf32, #tpu.memory_space<vmem>>, vector<1x8x128xf32>
    %9 = vector.shape_cast %8 : vector<1x8x128xf32> to vector<8x128xf32>
    %10 = vector.shape_cast %9 : vector<8x128xf32> to vector<1x8x128xf32>
    %11 = arith.cmpf oge, %6, %10 : vector<1x8x128xf32>
    %cst_7 = arith.constant 0.699999988 : f32
    %12 = vector.broadcast %cst_7 : f32 to vector<1x8x128xf32>
    %13 = arith.select %11, %12, %7 : vector<1x8x128xi1>, vector<1x8x128xf32>
    %c1 = arith.constant 1 : index
    %c0_8 = arith.constant 0 : index
    %c0_9 = arith.constant 0 : index
    %14 = vector.load %arg4[%c1, %c0_8, %c0_9] : memref<4x8x128xf32, #tpu.memory_space<vmem>>, vector<1x8x128xf32>
    %15 = vector.shape_cast %14 : vector<1x8x128xf32> to vector<8x128xf32>
    %16 = vector.shape_cast %15 : vector<8x128xf32> to vector<1x8x128xf32>
    %17 = arith.cmpf oge, %6, %16 : vector<1x8x128xf32>
    %cst_10 = arith.constant 1.000000e+00 : f32
    %18 = vector.broadcast %cst_10 : f32 to vector<1x8x128xf32>
    %19 = arith.select %17, %18, %13 : vector<1x8x128xi1>, vector<1x8x128xf32>
    %c2 = arith.constant 2 : index
    %c0_11 = arith.constant 0 : index
    %c0_12 = arith.constant 0 : index
    %20 = vector.load %arg4[%c2, %c0_11, %c0_12] : memref<4x8x128xf32, #tpu.memory_space<vmem>>, vector<1x8x128xf32>
    %21 = vector.shape_cast %20 : vector<1x8x128xf32> to vector<8x128xf32>
    %22 = vector.shape_cast %21 : vector<8x128xf32> to vector<1x8x128xf32>
    %23 = arith.cmpf oge, %6, %22 : vector<1x8x128xf32>
    %cst_13 = arith.constant 1.500000e+00 : f32
    %24 = vector.broadcast %cst_13 : f32 to vector<1x8x128xf32>
    %25 = arith.select %23, %24, %19 : vector<1x8x128xi1>, vector<1x8x128xf32>
    %c3 = arith.constant 3 : index
    %c0_14 = arith.constant 0 : index
    %c0_15 = arith.constant 0 : index
    %26 = vector.load %arg4[%c3, %c0_14, %c0_15] : memref<4x8x128xf32, #tpu.memory_space<vmem>>, vector<1x8x128xf32>
    %27 = vector.shape_cast %26 : vector<1x8x128xf32> to vector<8x128xf32>
    %28 = vector.shape_cast %27 : vector<8x128xf32> to vector<1x8x128xf32>
    %29 = arith.cmpf oge, %6, %28 : vector<1x8x128xf32>
    %cst_16 = arith.constant 2.000000e+00 : f32
    %30 = vector.broadcast %cst_16 : f32 to vector<1x8x128xf32>
    %31 = arith.select %29, %30, %25 : vector<1x8x128xi1>, vector<1x8x128xf32>
    %32 = arith.subf %4, %6 : vector<1x8x128xf32>
    %c0_17 = arith.constant 0 : index
    %c0_18 = arith.constant 0 : index
    %33 = vector.load %arg6[%c0_17, %c0_18] : memref<8x128xf32, #tpu.memory_space<vmem>>, vector<8x128xf32>
    %34 = arith.mulf %32, %32 : vector<1x8x128xf32>
    %35 = arith.mulf %34, %31 : vector<1x8x128xf32>
    %cst_19 = arith.constant dense<0.000000e+00> : vector<8x128xf32>
    %36 = vector.multi_reduction <add>, %35, %cst_19 [0] : vector<1x8x128xf32> to vector<8x128xf32>
    %37 = arith.addf %33, %36 : vector<8x128xf32>
    %c0_20 = arith.constant 0 : index
    %c0_21 = arith.constant 0 : index
    %38 = vector.load %arg6[%c0_20, %c0_21] : memref<8x128xf32, #tpu.memory_space<vmem>>, vector<8x128xf32>
    tpu.vector_store %arg6[%c0_20, %c0_21], %37 {strides = array<i32>} : memref<8x128xf32, #tpu.memory_space<vmem>>, vector<8x128xf32>,
    %c0_i32_22 = arith.constant 0 : i32
    %39 = arith.cmpi eq, %arg1, %c0_i32_22 : i32
    %40 = arith.extui %39 : i1 to i32
    %c0_i32_23 = arith.constant 0 : i32
    %41 = arith.cmpi ne, %40, %c0_i32_23 : i32
    scf.if %41 {
      %c0_24 = arith.constant 0 : index
      %c0_25 = arith.constant 0 : index
      %42 = vector.load %arg6[%c0_24, %c0_25] : memref<8x128xf32, #tpu.memory_space<vmem>>, vector<8x128xf32>
      %43 = vector.shape_cast %42 : vector<8x128xf32> to vector<1x8x128xf32>
      %cst_26 = arith.constant dense<0.000000e+00> : vector<1xf32>
      %44 = vector.multi_reduction <add>, %43, %cst_26 [1, 2] : vector<1x8x128xf32> to vector<1xf32>
      %45 = vector.shape_cast %44 : vector<1xf32> to vector<1x1x1xf32>
      %46 = vector.extract %45[0, 0, 0] : f32 from vector<1x1x1xf32>
      %c0_27 = arith.constant 0 : index
      %c0_28 = arith.constant 0 : index
      %47 = memref.load %arg5[%c0_27, %c0_28] : memref<1x1xf32, #tpu.memory_space<smem>>
      memref.store %46, %arg5[%c0_27, %c0_28] : memref<1x1xf32, #tpu.memory_space<smem>>
    } else {
    }
    return
  }
  func.func @transform_0(%arg0: i32, %arg1: i32) -> (i32, i32) {
    %c1_i32 = arith.constant 1 : i32
    %0 = arith.muli %arg0, %c1_i32 : i32
    %1 = arith.addi %0, %arg1 : i32
    %c0_i32 = arith.constant 0 : i32
    %c0_i32_0 = arith.constant 0 : i32
    return %1, %c0_i32 : i32, i32
  }
  func.func @transform_1(%arg0: i32, %arg1: i32) -> (i32, i32) {
    %c1_i32 = arith.constant 1 : i32
    %0 = arith.muli %arg0, %c1_i32 : i32
    %1 = arith.addi %0, %arg1 : i32
    %c0_i32 = arith.constant 0 : i32
    %c0_i32_0 = arith.constant 0 : i32
    return %1, %c0_i32 : i32, i32
  }
  func.func @transform_2(%arg0: i32, %arg1: i32) -> (i32, i32, i32) {
    %c0_i32 = arith.constant 0 : i32
    %c0_i32_0 = arith.constant 0 : i32
    %c0_i32_1 = arith.constant 0 : i32
    %c0_i32_2 = arith.constant 0 : i32
    return %c0_i32, %c0_i32_0, %c0_i32_1 : i32, i32, i32
  }
  func.func @transform_3(%arg0: i32, %arg1: i32) -> (i32, i32) {
    %c0_i32 = arith.constant 0 : i32
    %c0_i32_0 = arith.constant 0 : i32
    return %arg0, %c0_i32 : i32, i32
  }
}

</mosaic_0001>

<llo_original>
// kernel: tpu_custom_call.1
$region0: #{tpu_custom_call.1}
  #allocation0 [shape = 'u32[]', space=smem, size = 0x4, offset = 0x4, fixed_abs, tag = 'smem constant byte address 0x4 - core index']
  #allocation1 [shape = 'u32[72,128]{1,0:T(1,128)}', space=vmem, size = 0x9000, scoped, tag = 'internal scratch']
  #allocation2 [shape = 'f32[8,128]{1,0:T(8,128)}', space=vmem, size = 0x1000, scoped, tag = 'scratch operand']
  %s0 = inlined_call_operand.hbm [shape: f32[8,128], index: 0, kind: input, shape index: {}]
  %s1 = inlined_call_operand.hbm [shape: f32[8,128], index: 1, kind: input, shape index: {}]
  %s2 = inlined_call_operand.hbm [shape: f32[4,8,128], index: 2, kind: input, shape index: {}]
  %s3 = inlined_call_operand.hbm [shape: f32[1,1], index: 3, kind: output, shape index: {}]
  %s4 = sld [smem:[#allocation0]]
  $region42: #{tpu_custom_call.1} parent=0
    _
  %s6 = ssub.s32 1, %s4
  %s7 = scalar_select 0, %s6, %s4
  $region1: #{tpu_custom_call.1} parent=0
    #allocation3 [shape = 'u8[4096]{0}', space=vmem, size = 0x1000, scoped, tag = 'input window, operand 0, single buffered']
    #allocation4 [shape = 's32[1]{0}', space=sflag, size = 0x4, scoped, tag = 'scoped memory for tpu_custom_call.1']
    #allocation5 [shape = 's32[1]{0}', space=sflag, size = 0x4, scoped, tag = 'scoped memory for tpu_custom_call.1']
    #allocation6 [shape = 'u8[4096]{0}', space=vmem, size = 0x1000, scoped, tag = 'input window, operand 1, single buffered']
    #allocation7 [shape = 's32[1]{0}', space=sflag, size = 0x4, scoped, tag = 'scoped memory for tpu_custom_call.1']
    #allocation8 [shape = 'u8[16384]{0}', space=vmem, size = 0x4000, scoped, tag = 'input window, operand 2, single buffered']
    #allocation9 [shape = 'u8[512]{0}', space=smem, size = 0x200, scoped, tag = 'output window, operand 0, single buffered']
    %8 = vsyncpa [#allocation4], 0
    %9 = vsyncpa [#allocation7], 0
    %10 = vsyncpa [#allocation5], 0
    // Predicated region
    $region2: #{tpu_custom_call.1} parent=1 // pred_check
      _
    $region3: #{tpu_custom_call.1} parent=1 // pred_check_branch
      %12 = sbr.rel (0) target = $region5
    $region4: #{tpu_custom_call.1} parent=1 // pred_region
      %s13 = sadd.s32 0, 0
      %15 = vsyncadd [#allocation4], 0
      %s16 = smul.addr %s13, 8
      %s17 = scalar_lea.hbm %s0, %s16
      %s19 = sshll.u32 %s17, 4
      %s20 = int_to_ptr.hbm [resolvable:$true] %s19
      %s21 = sshll.u32 [#allocation3], 4
      %s22 = int_to_ptr.vmem [resolvable:$true] %s21
      %24 = dma.hbm_to_vmem [thread:$0]  %s20, 128, %s22, [#allocation4]
    $region5: #{tpu_custom_call.1} parent=1 // pred_fallthru
      _
    // Predicated region
    $region6: #{tpu_custom_call.1} parent=1 // pred_check
      _
    $region7: #{tpu_custom_call.1} parent=1 // pred_check_branch
      %26 = sbr.rel (0) target = $region9
    $region8: #{tpu_custom_call.1} parent=1 // pred_region
      %s27 = sadd.s32 0, 0
      %29 = vsyncadd [#allocation7], 0
      %s30 = smul.addr %s27, 8
      %s31 = scalar_lea.hbm %s1, %s30
      %s33 = sshll.u32 %s31, 4
      %s34 = int_to_ptr.hbm [resolvable:$true] %s33
      %s35 = sshll.u32 [#allocation6], 4
      %s36 = int_to_ptr.vmem [resolvable:$true] %s35
      %38 = dma.hbm_to_vmem [thread:$0]  %s34, 128, %s36, [#allocation7]
    $region9: #{tpu_custom_call.1} parent=1 // pred_fallthru
      _
    // Predicated region
    $region10: #{tpu_custom_call.1} parent=1 // pred_check
      _
    $region11: #{tpu_custom_call.1} parent=1 // pred_check_branch
      %40 = sbr.rel (0) target = $region13
    $region12: #{tpu_custom_call.1} parent=1 // pred_region
      %42 = vsyncadd [#allocation7], 0
      %s43 = sshll.u32 %s2, 4
      %s44 = int_to_ptr.hbm [resolvable:$true] %s43
      %s45 = sshll.u32 [#allocation8], 4
      %s46 = int_to_ptr.vmem [resolvable:$true] %s45
      %51 = dma.hbm_to_vmem [thread:$0]  %s44, 512, %s46, [#allocation7], 128, 128, 8
    $region13: #{tpu_custom_call.1} parent=1 // pred_fallthru
      _
    // Predicated region
    $region14: #{tpu_custom_call.1} parent=1 // pred_check
      _
    $region15: #{tpu_custom_call.1} parent=1 // pred_check_branch
      %53 = sbr.rel (0) target = $region17
    $region16: #{tpu_custom_call.1} parent=1 // pred_region
      %55 = dma.done [#allocation4], 128
    $region17: #{tpu_custom_call.1} parent=1 // pred_fallthru
      _
    // Predicated region
    $region18: #{tpu_custom_call.1} parent=1 // pred_check
      _
    $region19: #{tpu_custom_call.1} parent=1 // pred_check_branch
      %57 = sbr.rel (0) target = $region21
    $region20: #{tpu_custom_call.1} parent=1 // pred_region
      %59 = dma.done [#allocation7], 128
    $region21: #{tpu_custom_call.1} parent=1 // pred_fallthru
      _
    // Predicated region
    $region22: #{tpu_custom_call.1} parent=1 // pred_check
      _
    $region23: #{tpu_custom_call.1} parent=1 // pred_check_branch
      %61 = sbr.rel (0) target = $region25
    $region24: #{tpu_custom_call.1} parent=1 // pred_region
      %63 = dma.done [#allocation7], 512
    $region25: #{tpu_custom_call.1} parent=1 // pred_fallthru
      _
    %s64 = sadd.s32 0, 0
    %s65 = sadd.s32 0, 0
    %p66 = scmp.eq.s32.totalorder 0, 0
    // Predicated region
    $region26: #{tpu_custom_call.1} parent=1 // pred_check
      %p67 = pneg %p66
    $region27: #{tpu_custom_call.1} parent=1 // pred_check_branch
      %69 = sbr.rel (%p67) target = $region29
    $region28: #{tpu_custom_call.1} parent=1 // pred_region
      %70 = vst [vmem:[#allocation2] sm:$0xff] 0.0
    $region29: #{tpu_custom_call.1} parent=1 // pred_fallthru
      _
    %v71 = vld [vmem:[#allocation3] sm:$0xff]
    %v72 = vld [vmem:[#allocation6] sm:$0xff]
    %v73 = vld [vmem:[#allocation8] sm:$0xff]
    %vm74 = vcmp.ge.f32.partialorder %v72, %v73
    %v75 = vsel %vm74, 0.7, 0.5
    %s76 = scalar_lea.vmem [#allocation8], 8
    %v77 = vld [vmem:[%s76] sm:$0xff]
    %vm78 = vcmp.ge.f32.partialorder %v72, %v77
    %v79 = vsel %vm78, 1.0, %v75
    %s80 = scalar_lea.vmem [#allocation8], 16
    %v81 = vld [vmem:[%s80] sm:$0xff]
    %vm82 = vcmp.ge.f32.partialorder %v72, %v81
    %v83 = vsel %vm82, 1.5, %v79
    %s84 = scalar_lea.vmem [#allocation8], 24
    %v85 = vld [vmem:[%s84] sm:$0xff]
    %vm86 = vcmp.ge.f32.partialorder %v72, %v85
    %v87 = vsel %vm86, 2.0, %v83
    %v88 = vsub.f32 %v71, %v72
    %v89 = vld [vmem:[#allocation2] sm:$0xff]
    %v90 = vmul.f32 %v88, %v88
    %v91 = vmul.f32 %v90, %v87
    %v92 = vadd.f32 %v91, 0.0
    %v93 = vadd.f32 %v89, %v92
    %94 = vst [vmem:[#allocation2] sm:$0xff] %v93
    // Predicated region
    $region30: #{tpu_custom_call.1} parent=1 // pred_check
      %p95 = pneg %p66
    $region31: #{tpu_custom_call.1} parent=1 // pred_check_branch
      %97 = sbr.rel (%p95) target = $region33
    $region32: #{tpu_custom_call.1} parent=1 // pred_region
      %v98 = vld [vmem:[#allocation2] sm:$0xff]
      %99 = vadd.xlane.f32.xlu0 %v98
      %v100 = vpop.xlane.xlu0 %99
      %v101 = vrot.slane %v100, 4
      %v102 = vadd.f32 %v100, %v101
      %v103 = vrot.slane %v102, 2
      %v104 = vadd.f32 %v102, %v103
      %v105 = vrot.slane %v104, 1
      %v106 = vadd.f32 %v104, %v105
      %s107 = vtos %v106
      %s108 = scalar_lea.smem [#allocation9], 0
      %109 = sst [smem:[%s108]] %s107
    $region33: #{tpu_custom_call.1} parent=1 // pred_fallthru
      _
    // Predicated region
    $region34: #{tpu_custom_call.1} parent=1 // pred_check
      _
    $region35: #{tpu_custom_call.1} parent=1 // pred_check_branch
      %111 = sbr.rel (0) target = $region37
    $region36: #{tpu_custom_call.1} parent=1 // pred_region
      %113 = vsyncadd [#allocation5], 0
      %s115 = sshll.u32 %s3, 4
      %s116 = int_to_ptr.hbm [resolvable:$true] %s115
      %118 = dma.smem_to_hbm [#allocation9], 16, %s116, [#allocation5]
    $region37: #{tpu_custom_call.1} parent=1 // pred_fallthru
      _
    // Predicated region
    $region38: #{tpu_custom_call.1} parent=1 // pred_check
      _
    $region39: #{tpu_custom_call.1} parent=1 // pred_check_branch
      %120 = sbr.rel (0) target = $region41
    $region40: #{tpu_custom_call.1} parent=1 // pred_region
      %122 = dma.done [#allocation5], 16
    $region41: #{tpu_custom_call.1} parent=1 // pred_fallthru
      _
    %123 = sfence
    %124 = vsyncpa [#allocation4], 1
    %125 = vsyncpa [#allocation7], 1
    %126 = vsyncpa [#allocation5], 1

</llo_original>
